<compile_context>
chip_gen: v7x
topology: tpu7x:2x2x1
jax: 0.10.0
libtpu: 0.0.40
codegen_flags: <defaults>
</compile_context>

<pallas_src>
import jax
import jax.numpy as jnp
from jax.experimental import pallas as pl
from jax.experimental.pallas import tpu as pltpu


def se_kernel(x_ref, w1t_ref, b1_ref, w2_ref, b2_ref, o_ref):
    # x_ref: (1, C, HW)   w1t_ref: (C, Cr) == W1^T   b1_ref: (1, Cr)
    # w2_ref: (C, Cr)     b2_ref: (C, 1)             o_ref: (1, C, HW)
    x = x_ref[0]                                             # (C, HW)
    hw = x.shape[1]

    # ---- squeeze: global average pool over spatial (lane) axis ----
    pooled = jnp.sum(x, axis=1, keepdims=True) * (1.0 / hw)  # (C, 1)

    # ---- compress (1x1 conv) + ReLU : h[j] = sum_c W1[j,c] * pooled[c] ----
    # VPU multiply + cross-sublane reduce; avoids a 1-row MXU pass.
    h = jnp.sum(w1t_ref[...] * pooled, axis=0, keepdims=True) + b1_ref[...]  # (1, Cr)
    h = jnp.maximum(h, 0.0)

    # ---- excitation (1x1 conv) + sigmoid : s[c] = sum_j W2[c,j] * h[j] ----
    s = jnp.sum(w2_ref[...] * h, axis=1, keepdims=True) + b2_ref[...]        # (C, 1)

    # fold the residual into the scale:  x*sigmoid(s) + x == x*(sigmoid(s)+1)
    scale = jax.nn.sigmoid(s) + 1.0                                          # (C, 1)

    # ---- scale (per-channel broadcast over lanes) ----
    o_ref[0] = (x * scale).astype(o_ref.dtype)


def se_forward(x_nchw, w1, b1, w2, b2):
    """x_nchw: (B, C, H, W) float32.  Weights follow PyTorch Conv2d layout:
       w1: (Cr, C, 1, 1), b1: (Cr,), w2: (C, Cr, 1, 1), b2: (C,)."""
    B, C, H, W = x_nchw.shape
    Cr = w1.shape[0]
    HW = H * W

    # channels-first, flattened spatial -- free (metadata-only) reshape,
    # no HBM transpose on either side of the kernel.
    x = x_nchw.reshape(B, C, HW)

    # 1x1 conv weights -> tiny matrices with C on the sublane axis
    w1t = jnp.transpose(w1.reshape(Cr, C), (1, 0))   # (C, Cr)  == W1^T
    b1m = b1.reshape(1, Cr)
    w2m = w2.reshape(C, Cr)                          # (C, Cr)
    b2m = b2.reshape(C, 1)

    # NOTE: one (1, C, HW) block per grid step; at production shapes
    # (e.g. HW=128*128) keep an eye on scoped VMEM (raise vmem_limit_bytes
    # or tile HW with a two-pass pool/scale scheme on v5e/v7x).
    out = pl.pallas_call(
        se_kernel,
        out_shape=jax.ShapeDtypeStruct((B, C, HW), x.dtype),
        grid_spec=pltpu.PrefetchScalarGridSpec(
            num_scalar_prefetch=0,
            grid=(B,),
            in_specs=[
                pl.BlockSpec((1, C, HW), lambda b: (b, 0, 0)),
                pl.BlockSpec((C, Cr), lambda b: (0, 0)),   # VMEM-resident across grid
                pl.BlockSpec((1, Cr), lambda b: (0, 0)),
                pl.BlockSpec((C, Cr), lambda b: (0, 0)),
                pl.BlockSpec((C, 1), lambda b: (0, 0)),
            ],
            out_specs=pl.BlockSpec((1, C, HW), lambda b: (b, 0, 0)),
        ),
        compiler_params=pltpu.CompilerParams(
            dimension_semantics=("parallel",)),
    )(x, w1t, b1m, w2m, b2m)

    # free reshape back to NCHW
    return out.reshape(B, C, H, W)


def se_reference(x_nchw, w1, b1, w2, b2):
    """Plain-JAX reference matching the PyTorch forward."""
    pooled = jnp.mean(x_nchw, axis=(2, 3), keepdims=True)            # (B,C,1,1)
    Cr, C = w1.shape[0], w1.shape[1]
    h = jnp.einsum("bcxy,oc->boxy", pooled, w1.reshape(Cr, C)) + b1.reshape(1, Cr, 1, 1)
    h = jnp.maximum(h, 0.0)
    s = jnp.einsum("boxy,co->bcxy", h, w2.reshape(C, Cr)) + b2.reshape(1, C, 1, 1)
    s = jax.nn.sigmoid(s)
    return x_nchw * s + x_nchw


if __name__ == "__main__":
    B, C, H, W = 2, 128, 16, 16
    ratio = 16
    Cr = C // ratio

    key = jax.random.PRNGKey(0)
    kx, k1, k2, k3, k4 = jax.random.split(key, 5)

    x = jax.random.uniform(kx, (B, C, H, W), dtype=jnp.float32)
    # deterministic parameter init (PyTorch Conv2d shapes)
    w1 = jax.random.normal(k1, (Cr, C, 1, 1), dtype=jnp.float32) * (1.0 / jnp.sqrt(C))
    b1 = jax.random.normal(k2, (Cr,), dtype=jnp.float32) * 0.01
    w2 = jax.random.normal(k3, (C, Cr, 1, 1), dtype=jnp.float32) * (1.0 / jnp.sqrt(Cr))
    b2 = jax.random.normal(k4, (C,), dtype=jnp.float32) * 0.01

    out = se_forward(x, w1, b1, w2, b2)
    out = jax.block_until_ready(out)

    ref = se_reference(x, w1, b1, w2, b2)
    assert out.shape == (B, C, H, W)
    assert jnp.allclose(out, ref, atol=1e-5, rtol=1e-5), "mismatch vs reference"

    print("KERNEL_OK")
</pallas_src>

<mosaic_0001>
module attributes {stable_mosaic.version = 11 : i64} {
  func.func @se_kernel(%arg0: i32, %arg1: memref<1x128x256xf32, #tpu.memory_space<vmem>>, %arg2: memref<128x8xf32, #tpu.memory_space<vmem>>, %arg3: memref<1x8xf32, #tpu.memory_space<vmem>>, %arg4: memref<128x8xf32, #tpu.memory_space<vmem>>, %arg5: memref<128x1xf32, #tpu.memory_space<vmem>>, %arg6: memref<1x128x256xf32, #tpu.memory_space<vmem>>) attributes {dimension_semantics = [#tpu.dimension_semantics<parallel>], iteration_bounds = array<i64: 2>, scalar_prefetch = 0 : i64, scratch_operands = 0 : i64, tpu.core_type = #tpu.core_type<tc>, window_params = [{transform_indices = @transform_0, window_bounds = array<i64: 1, 128, 256>}, {pipeline_mode = #tpu.pipeline_mode<synchronous>, transform_indices = @transform_1, window_bounds = array<i64: 128, 8>}, {pipeline_mode = #tpu.pipeline_mode<synchronous>, transform_indices = @transform_2, window_bounds = array<i64: 1, 8>}, {pipeline_mode = #tpu.pipeline_mode<synchronous>, transform_indices = @transform_3, window_bounds = array<i64: 128, 8>}, {pipeline_mode = #tpu.pipeline_mode<synchronous>, transform_indices = @transform_4, window_bounds = array<i64: 128, 1>}, {transform_indices = @transform_5, window_bounds = array<i64: 1, 128, 256>}]} {
    %c0 = arith.constant 0 : index
    %c0_0 = arith.constant 0 : index
    %c0_1 = arith.constant 0 : index
    %0 = vector.load %arg1[%c0, %c0_0, %c0_1] : memref<1x128x256xf32, #tpu.memory_space<vmem>>, vector<1x128x256xf32>
    %1 = vector.shape_cast %0 : vector<1x128x256xf32> to vector<128x256xf32>
    %cst = arith.constant dense<0.000000e+00> : vector<128xf32>
    %2 = vector.multi_reduction <add>, %1, %cst [1] : vector<128x256xf32> to vector<128xf32>
    %3 = vector.shape_cast %2 : vector<128xf32> to vector<128x1xf32>
    %cst_2 = arith.constant 3.906250e-03 : f32
    %4 = vector.broadcast %cst_2 : f32 to vector<128x1xf32>
    %5 = arith.mulf %3, %4 : vector<128x1xf32>
    %c0_3 = arith.constant 0 : index
    %c0_4 = arith.constant 0 : index
    %6 = vector.load %arg2[%c0_3, %c0_4] : memref<128x8xf32, #tpu.memory_space<vmem>>, vector<128x8xf32>
    %7 = vector.broadcast %5 : vector<128x1xf32> to vector<128x8xf32>
    %8 = arith.mulf %6, %7 : vector<128x8xf32>
    %cst_5 = arith.constant dense<0.000000e+00> : vector<8xf32>
    %9 = vector.multi_reduction <add>, %8, %cst_5 [0] : vector<128x8xf32> to vector<8xf32>
    %10 = vector.shape_cast %9 : vector<8xf32> to vector<1x8xf32>
    %c0_6 = arith.constant 0 : index
    %c0_7 = arith.constant 0 : index
    %11 = vector.load %arg3[%c0_6, %c0_7] : memref<1x8xf32, #tpu.memory_space<vmem>>, vector<1x8xf32>
    %12 = arith.addf %10, %11 : vector<1x8xf32>
    %cst_8 = arith.constant 0.000000e+00 : f32
    %13 = vector.broadcast %cst_8 : f32 to vector<1x8xf32>
    %14 = arith.maximumf %12, %13 : vector<1x8xf32>
    %c0_9 = arith.constant 0 : index
    %c0_10 = arith.constant 0 : index
    %15 = vector.load %arg4[%c0_9, %c0_10] : memref<128x8xf32, #tpu.memory_space<vmem>>, vector<128x8xf32>
    %16 = vector.broadcast %14 : vector<1x8xf32> to vector<128x8xf32>
    %17 = arith.mulf %15, %16 : vector<128x8xf32>
    %cst_11 = arith.constant dense<0.000000e+00> : vector<128xf32>
    %18 = vector.multi_reduction <add>, %17, %cst_11 [1] : vector<128x8xf32> to vector<128xf32>
    %19 = vector.shape_cast %18 : vector<128xf32> to vector<128x1xf32>
    %c0_12 = arith.constant 0 : index
    %c0_13 = arith.constant 0 : index
    %20 = vector.load %arg5[%c0_12, %c0_13] : memref<128x1xf32, #tpu.memory_space<vmem>>, vector<128x1xf32>
    %21 = arith.addf %19, %20 : vector<128x1xf32>
    %22 = arith.negf %21 : vector<128x1xf32>
    %23 = math.exp %22 : vector<128x1xf32>
    %cst_14 = arith.constant 1.000000e+00 : f32
    %24 = vector.broadcast %cst_14 : f32 to vector<128x1xf32>
    %25 = arith.addf %24, %23 : vector<128x1xf32>
    %26 = arith.divf %24, %25 : vector<128x1xf32>
    %cst_15 = arith.constant 1.000000e+00 : f32
    %27 = vector.broadcast %cst_15 : f32 to vector<128x1xf32>
    %28 = arith.addf %26, %27 : vector<128x1xf32>
    %29 = vector.broadcast %28 : vector<128x1xf32> to vector<128x256xf32>
    %30 = arith.mulf %1, %29 : vector<128x256xf32>
    %c0_16 = arith.constant 0 : index
    %c0_17 = arith.constant 0 : index
    %c0_18 = arith.constant 0 : index
    %31 = vector.load %arg6[%c0_16, %c0_17, %c0_18] : memref<1x128x256xf32, #tpu.memory_space<vmem>>, vector<1x128x256xf32>
    %32 = vector.shape_cast %31 : vector<1x128x256xf32> to vector<128x256xf32>
    %33 = vector.shape_cast %30 : vector<128x256xf32> to vector<1x128x256xf32>
    tpu.vector_store %arg6[%c0_16, %c0_17, %c0_18], %33 {strides = array<i32>} : memref<1x128x256xf32, #tpu.memory_space<vmem>>, vector<1x128x256xf32>,
    return
  }
  func.func @transform_0(%arg0: i32) -> (i32, i32, i32) {
    %c0_i32 = arith.constant 0 : i32
    %c0_i32_0 = arith.constant 0 : i32
    %c0_i32_1 = arith.constant 0 : i32
    return %arg0, %c0_i32, %c0_i32_0 : i32, i32, i32
  }
  func.func @transform_1(%arg0: i32) -> (i32, i32) {
    %c0_i32 = arith.constant 0 : i32
    %c0_i32_0 = arith.constant 0 : i32
    %c0_i32_1 = arith.constant 0 : i32
    return %c0_i32, %c0_i32_0 : i32, i32
  }
  func.func @transform_2(%arg0: i32) -> (i32, i32) {
    %c0_i32 = arith.constant 0 : i32
    %c0_i32_0 = arith.constant 0 : i32
    %c0_i32_1 = arith.constant 0 : i32
    return %c0_i32, %c0_i32_0 : i32, i32
  }
  func.func @transform_3(%arg0: i32) -> (i32, i32) {
    %c0_i32 = arith.constant 0 : i32
    %c0_i32_0 = arith.constant 0 : i32
    %c0_i32_1 = arith.constant 0 : i32
    return %c0_i32, %c0_i32_0 : i32, i32
  }
  func.func @transform_4(%arg0: i32) -> (i32, i32) {
    %c0_i32 = arith.constant 0 : i32
    %c0_i32_0 = arith.constant 0 : i32
    %c0_i32_1 = arith.constant 0 : i32
    return %c0_i32, %c0_i32_0 : i32, i32
  }
  func.func @transform_5(%arg0: i32) -> (i32, i32, i32) {
    %c0_i32 = arith.constant 0 : i32
    %c0_i32_0 = arith.constant 0 : i32
    %c0_i32_1 = arith.constant 0 : i32
    return %arg0, %c0_i32, %c0_i32_0 : i32, i32, i32
  }
}

</mosaic_0001>

<llo_original>
// kernel: tpu_custom_call.1
$region0: #{tpu_custom_call.1}
  #allocation0 [shape = 'u32[]', space=smem, size = 0x4, offset = 0x4, fixed_abs, tag = 'smem constant byte address 0x4 - core index']
  #allocation1 [shape = 'u32[144,128]{1,0:T(1,128)}', space=vmem, size = 0x12000, scoped, tag = 'internal scratch']
  %s0 = inlined_call_operand.hbm [shape: f32[2,128,256], index: 0, kind: input, shape index: {}]
  %s1 = inlined_call_operand.vmem [shape: f32[128,8], index: 1, kind: input, shape index: {}]
  %s2 = inlined_call_operand.vmem [shape: f32[1,8], index: 2, kind: input, shape index: {}]
  %s3 = inlined_call_operand.vmem [shape: f32[128,8], index: 3, kind: input, shape index: {}]
  %s4 = inlined_call_operand.vmem [shape: f32[128,1], index: 4, kind: input, shape index: {}]
  %s5 = inlined_call_operand.hbm [shape: f32[2,128,256], index: 5, kind: output, shape index: {}]
  %s6 = sld [smem:[#allocation0]]
  $region57: #{tpu_custom_call.1} parent=0
    _
  %s8 = ssub.s32 1, %s6
  %s9 = scalar_select 0, %s8, %s6
  $region1: #{tpu_custom_call.1} parent=0
    #allocation2 [shape = 'u8[262144]{0}', space=vmem, size = 0x40000, scoped, tag = 'input window, operand 0']
    #allocation3 [shape = 's32[2]{0}', space=sflag, size = 0x8, scoped, tag = 'scoped memory for tpu_custom_call.1']
    #allocation4 [shape = 's32[2]{0}', space=sflag, size = 0x8, scoped, tag = 'scoped memory for tpu_custom_call.1']
    #allocation5 [shape = 'u8[262144]{0}', space=vmem, size = 0x40000, scoped, tag = 'output window, operand 0']
    %10 = vsyncpa [#allocation3], 0
    %s11 = scalar_lea.sflag [#allocation3], 1
    %12 = vsyncpa %s11, 0
    %13 = vsyncpa [#allocation4], 0
    %s14 = scalar_lea.sflag [#allocation4], 1
    %15 = vsyncpa %s14, 0
    loop: start=0, step=1, limit=4
    $region2: #{tpu_custom_call.1} parent=1 // loop_pre_header
      _
    $region3: #{tpu_custom_call.1} parent=1 // loop_header
      %s17 = sphi 0, %s21
      %p18 = scmp.ge.s32.totalorder %s17, 4
      %s27 = sphi 0, %s29
      %s30 = sphi 0, %s27
      %s31 = sphi 0, %s30
      %s47 = sphi 0, %s31
      %s51 = sphi 0, %s51
      %s53 = sphi 0, %s51
      %s54 = sphi 0, %s53
      %s68 = sphi 0, %s54
      %s72 = sphi 0, %s72
      %s74 = sphi 0, %s72
      %s75 = sphi 0, %s74
      %s89 = sphi 0, %s75
      %s93 = sphi 0, %s93
      %s95 = sphi 0, %s93
      %s96 = sphi 0, %s95
      %s110 = sphi 0, %s96
      %s114 = sphi 0, %s114
      %s116 = sphi 0, %s114
      %s117 = sphi 0, %s116
      %s131 = sphi 0, %s117
      %s137 = sphi 0, %s139
      %s140 = sphi 0, %s137
      %s141 = sphi 0, %s140
      %s157 = sphi 0, %s141
    $region4: #{tpu_custom_call.1} parent=1 // loop_header_branch
      %20 = sbr.rel (%p18) target = $region8
    $region5: #{tpu_custom_call.1} parent=1 // loop_body
      %s22 = ssub.s32 %s17, 1
      %s23 = ssub.s32 %s17, 2
      %s24 = sadd.s32 %s17, 1
      %s25 = ssub.s32 %s17, %s24
      %p26 = scmp.eq.s32.totalorder %s25, 0
      %s28 = sadd.s32 %s27, 1
      %s29 = scalar_select %p26, %s27, %s28
      %p32 = pneg %p26
      %p33 = scmp.eq.s32.totalorder %s17, 1
      %p34 = por %p32, %p33
      %p35 = scmp.ne.s32.totalorder %s27, %s30
      %p36 = scmp.eq.s32.totalorder %s17, 0
      %p37 = por %p35, %p36
      %p38 = scmp.ne.s32.totalorder %s27, %s30
      %p39 = scmp.eq.s32.totalorder %s22, 1
      %p40 = por %p38, %p39
      %p41 = scmp.ne.s32.totalorder %s30, %s31
      %p42 = scmp.eq.s32.totalorder %s22, 0
      %p43 = por %p41, %p42
      %p44 = scmp.ne.s32.totalorder %s30, %s31
      %p45 = scmp.eq.s32.totalorder %s23, 1
      %p46 = por %p44, %p45
      %p48 = scmp.ne.s32.totalorder %s31, %s47
      %p49 = scmp.eq.s32.totalorder %s23, 0
      %p50 = por %p48, %p49
      %s52 = sadd.s32 %s51, 1
      %p55 = scmp.eq.s32.totalorder %s17, 1
      %p56 = scmp.ne.s32.totalorder %s51, %s53
      %p57 = scmp.eq.s32.totalorder %s17, 0
      %p58 = por %p56, %p57
      %p59 = scmp.ne.s32.totalorder %s51, %s53
      %p60 = scmp.eq.s32.totalorder %s22, 1
      %p61 = por %p59, %p60
      %p62 = scmp.ne.s32.totalorder %s53, %s54
      %p63 = scmp.eq.s32.totalorder %s22, 0
      %p64 = por %p62, %p63
      %p65 = scmp.ne.s32.totalorder %s53, %s54
      %p66 = scmp.eq.s32.totalorder %s23, 1
      %p67 = por %p65, %p66
      %p69 = scmp.ne.s32.totalorder %s54, %s68
      %p70 = scmp.eq.s32.totalorder %s23, 0
      %p71 = por %p69, %p70
      %s73 = sadd.s32 %s72, 1
      %p76 = scmp.eq.s32.totalorder %s17, 1
      %p77 = scmp.ne.s32.totalorder %s72, %s74
      %p78 = scmp.eq.s32.totalorder %s17, 0
      %p79 = por %p77, %p78
      %p80 = scmp.ne.s32.totalorder %s72, %s74
      %p81 = scmp.eq.s32.totalorder %s22, 1
      %p82 = por %p80, %p81
      %p83 = scmp.ne.s32.totalorder %s74, %s75
      %p84 = scmp.eq.s32.totalorder %s22, 0
      %p85 = por %p83, %p84
      %p86 = scmp.ne.s32.totalorder %s74, %s75
      %p87 = scmp.eq.s32.totalorder %s23, 1
      %p88 = por %p86, %p87
      %p90 = scmp.ne.s32.totalorder %s75, %s89
      %p91 = scmp.eq.s32.totalorder %s23, 0
      %p92 = por %p90, %p91
      %s94 = sadd.s32 %s93, 1
      %p97 = scmp.eq.s32.totalorder %s17, 1
      %p98 = scmp.ne.s32.totalorder %s93, %s95
      %p99 = scmp.eq.s32.totalorder %s17, 0
      %p100 = por %p98, %p99
      %p101 = scmp.ne.s32.totalorder %s93, %s95
      %p102 = scmp.eq.s32.totalorder %s22, 1
      %p103 = por %p101, %p102
      %p104 = scmp.ne.s32.totalorder %s95, %s96
      %p105 = scmp.eq.s32.totalorder %s22, 0
      %p106 = por %p104, %p105
      %p107 = scmp.ne.s32.totalorder %s95, %s96
      %p108 = scmp.eq.s32.totalorder %s23, 1
      %p109 = por %p107, %p108
      %p111 = scmp.ne.s32.totalorder %s96, %s110
      %p112 = scmp.eq.s32.totalorder %s23, 0
      %p113 = por %p111, %p112
      %s115 = sadd.s32 %s114, 1
      %p118 = scmp.eq.s32.totalorder %s17, 1
      %p119 = scmp.ne.s32.totalorder %s114, %s116
      %p120 = scmp.eq.s32.totalorder %s17, 0
      %p121 = por %p119, %p120
      %p122 = scmp.ne.s32.totalorder %s114, %s116
      %p123 = scmp.eq.s32.totalorder %s22, 1
      %p124 = por %p122, %p123
      %p125 = scmp.ne.s32.totalorder %s116, %s117
      %p126 = scmp.eq.s32.totalorder %s22, 0
      %p127 = por %p125, %p126
      %p128 = scmp.ne.s32.totalorder %s116, %s117
      %p129 = scmp.eq.s32.totalorder %s23, 1
      %p130 = por %p128, %p129
      %p132 = scmp.ne.s32.totalorder %s117, %s131
      %p133 = scmp.eq.s32.totalorder %s23, 0
      %p134 = por %p132, %p133
      %s135 = ssub.s32 %s17, %s24
      %p136 = scmp.eq.s32.totalorder %s135, 0
      %s138 = sadd.s32 %s137, 1
      %s139 = scalar_select %p136, %s137, %s138
      %p142 = pneg %p136
      %p143 = scmp.eq.s32.totalorder %s17, 1
      %p144 = por %p142, %p143
      %p145 = scmp.ne.s32.totalorder %s137, %s140
      %p146 = scmp.eq.s32.totalorder %s17, 0
      %p147 = por %p145, %p146
      %p148 = scmp.ne.s32.totalorder %s137, %s140
      %p149 = scmp.eq.s32.totalorder %s22, 1
      %p150 = por %p148, %p149
      %p151 = scmp.ne.s32.totalorder %s140, %s141
      %p152 = scmp.eq.s32.totalorder %s22, 0
      %p153 = por %p151, %p152
      %p154 = scmp.ne.s32.totalorder %s140, %s141
      %p155 = scmp.eq.s32.totalorder %s23, 1
      %p156 = por %p154, %p155
      %p158 = scmp.ne.s32.totalorder %s141, %s157
      %p159 = scmp.eq.s32.totalorder %s23, 0
      %p160 = por %p158, %p159
      %p161 = scmp.le.s32.totalorder 1, %s17
      %p162 = scmp.lt.s32.totalorder %s17, 3
      %p163 = pnand %p161, %p162
      %p164 = pneg %p163
      // Predicated region
      $region9: #{tpu_custom_call.1} parent=5 // pred_check
        _
      $region10: #{tpu_custom_call.1} parent=5 // pred_check_branch
        %166 = sbr.rel (%p163) target = $region12
      $region11: #{tpu_custom_call.1} parent=5 // pred_region
        %s167 = ssub.s32 %s17, 1
        // Predicated region
        $region13: #{tpu_custom_call.1} parent=11 // pred_check
          %p168 = pneg %p64
        $region14: #{tpu_custom_call.1} parent=11 // pred_check_branch
          %170 = sbr.rel (%p168) target = $region16
        $region15: #{tpu_custom_call.1} parent=11 // pred_region
          _
        $region16: #{tpu_custom_call.1} parent=11 // pred_fallthru
          _
        // Predicated region
        $region17: #{tpu_custom_call.1} parent=11 // pred_check
          %p171 = pneg %p85
        $region18: #{tpu_custom_call.1} parent=11 // pred_check_branch
          %173 = sbr.rel (%p171) target = $region20
        $region19: #{tpu_custom_call.1} parent=11 // pred_region
          _
        $region20: #{tpu_custom_call.1} parent=11 // pred_fallthru
          _
        // Predicated region
        $region21: #{tpu_custom_call.1} parent=11 // pred_check
          %p174 = pneg %p106
        $region22: #{tpu_custom_call.1} parent=11 // pred_check_branch
          %176 = sbr.rel (%p174) target = $region24
        $region23: #{tpu_custom_call.1} parent=11 // pred_region
          _
        $region24: #{tpu_custom_call.1} parent=11 // pred_fallthru
          _
        // Predicated region
        $region25: #{tpu_custom_call.1} parent=11 // pred_check
          %p177 = pneg %p127
        $region26: #{tpu_custom_call.1} parent=11 // pred_check_branch
          %179 = sbr.rel (%p177) target = $region28
        $region27: #{tpu_custom_call.1} parent=11 // pred_region
          _
        $region28: #{tpu_custom_call.1} parent=11 // pred_fallthru
          _
      $region12: #{tpu_custom_call.1} parent=5 // pred_fallthru
        _
      %p180 = scmp.lt.s32.totalorder %s17, 2
      // Predicated region
      $region29: #{tpu_custom_call.1} parent=5 // pred_check
        %p181 = pneg %p180
      $region30: #{tpu_custom_call.1} parent=5 // pred_check_branch
        %183 = sbr.rel (%p181) target = $region32
      $region31: #{tpu_custom_call.1} parent=5 // pred_region
        // Predicated region
        $region33: #{tpu_custom_call.1} parent=31 // pred_check
          %p184 = pneg %p37
        $region34: #{tpu_custom_call.1} parent=31 // pred_check_branch
          %186 = sbr.rel (%p184) target = $region36
        $region35: #{tpu_custom_call.1} parent=31 // pred_region
          %s187 = sand.u32 %s27, 1
          %s188 = scalar_lea.sflag [#allocation3], %s187
          %s189 = sand.u32 %s27, 1
          %s190 = smul.addr %s189, 256
          %s191 = scalar_lea.vmem [#allocation2], %s190
          %s193 = ssub.s32 4096, 4096
          %194 = vsyncadd %s188, %s193
          %s195 = smul.addr %s17, 32
          %s196 = smul.addr %s195, 128
          %s197 = scalar_lea.hbm %s0, %s196
          %s198 = sshll.u32 %s191, 4
          %s199 = int_to_ptr.vmem [resolvable:$true] %s198
          %204 = dma.hbm_to_vmem [thread:$0]  %s197, 4096, %s199, %s188, 256, 256, 16
        $region36: #{tpu_custom_call.1} parent=31 // pred_fallthru
          _
      $region32: #{tpu_custom_call.1} parent=5 // pred_fallthru
        _
      %p205 = scmp.le.s32.totalorder 1, %s17
      %p206 = scmp.lt.s32.totalorder %s17, 3
      %p207 = pnand %p205, %p206
      %p208 = pneg %p207
      // Predicated region
      $region37: #{tpu_custom_call.1} parent=5 // pred_check
        _
      $region38: #{tpu_custom_call.1} parent=5 // pred_check_branch
        %210 = sbr.rel (%p207) target = $region40
      $region39: #{tpu_custom_call.1} parent=5 // pred_region
        %s211 = ssub.s32 %s17, 1
        %s212 = sand.u32 %s30, 1
        %s213 = scalar_lea.sflag [#allocation3], %s212
        %s214 = sand.u32 %s30, 1
        %s215 = smul.addr %s214, 256
        %s216 = scalar_lea.vmem [#allocation2], %s215
        // Predicated region
        $region41: #{tpu_custom_call.1} parent=39 // pred_check
          %p217 = pneg %p43
        $region42: #{tpu_custom_call.1} parent=39 // pred_check_branch
          %219 = sbr.rel (%p217) target = $region44
        $region43: #{tpu_custom_call.1} parent=39 // pred_region
          %220 = dma.done %s213, 4096
        $region44: #{tpu_custom_call.1} parent=39 // pred_fallthru
          _
        %s221 = sand.u32 %s30, 1
        %s222 = scalar_lea.sflag [#allocation3], %s221
        %s223 = sand.u32 %s30, 1
        %s224 = smul.addr %s223, 256
        %s225 = scalar_lea.vmem [#allocation2], %s224
        %p226 = pneg %p43
        %p227 = pneg %p40
        %p228 = pneg %p64
        %p229 = pneg %p61
        %p230 = pneg %p85
        %p231 = pneg %p82
        %p232 = pneg %p106
        %p233 = pneg %p103
        %p234 = pneg %p127
        %p235 = pneg %p124
        %p236 = pneg %p153
        %p237 = pneg %p150
        %s238 = sand.u32 %s140, 1
        %s239 = scalar_lea.sflag [#allocation4], %s238
        %s240 = sand.u32 %s140, 1
        %s241 = smul.addr %s240, 256
        %s242 = scalar_lea.vmem [#allocation5], %s241
        %v243 = vld [vmem:[%s216] sm:$0xff]
        %v244 = vld [vmem:[%s216 + $0x8] sm:$0xff]
        %v245 = vld [vmem:[%s216 + $0x10] sm:$0xff]
        %v246 = vld [vmem:[%s216 + $0x18] sm:$0xff]
        %v247 = vld [vmem:[%s216 + $0x20] sm:$0xff]
        %v248 = vld [vmem:[%s216 + $0x28] sm:$0xff]
        %v249 = vld [vmem:[%s216 + $0x30] sm:$0xff]
        %v250 = vld [vmem:[%s216 + $0x38] sm:$0xff]
        %v251 = vld [vmem:[%s216 + $0x40] sm:$0xff]
        %v252 = vld [vmem:[%s216 + $0x48] sm:$0xff]
        %v253 = vld [vmem:[%s216 + $0x50] sm:$0xff]
        %v254 = vld [vmem:[%s216 + $0x58] sm:$0xff]
        %v255 = vld [vmem:[%s216 + $0x60] sm:$0xff]
        %v256 = vld [vmem:[%s216 + $0x68] sm:$0xff]
        %v257 = vld [vmem:[%s216 + $0x70] sm:$0xff]
        %v258 = vld [vmem:[%s216 + $0x78] sm:$0xff]
        %v259 = vld [vmem:[%s216 + $0x80] sm:$0xff]
        %v260 = vld [vmem:[%s216 + $0x88] sm:$0xff]
        %v261 = vld [vmem:[%s216 + $0x90] sm:$0xff]
        %v262 = vld [vmem:[%s216 + $0x98] sm:$0xff]
        %v263 = vld [vmem:[%s216 + $0xa0] sm:$0xff]
        %v264 = vld [vmem:[%s216 + $0xa8] sm:$0xff]
        %v265 = vld [vmem:[%s216 + $0xb0] sm:$0xff]
        %v266 = vld [vmem:[%s216 + $0xb8] sm:$0xff]
        %v267 = vld [vmem:[%s216 + $0xc0] sm:$0xff]
        %v268 = vld [vmem:[%s216 + $0xc8] sm:$0xff]
        %v269 = vld [vmem:[%s216 + $0xd0] sm:$0xff]
        %v270 = vld [vmem:[%s216 + $0xd8] sm:$0xff]
        %v271 = vld [vmem:[%s216 + $0xe0] sm:$0xff]
        %v272 = vld [vmem:[%s216 + $0xe8] sm:$0xff]
        %v273 = vld [vmem:[%s216 + $0xf0] sm:$0xff]
        %v274 = vld [vmem:[%s216 + $0xf8] sm:$0xff]
        %v275 = vadd.f32 %v243, %v244
        %276 = vadd.xlane.f32.xlu0 %v275
        %v277 = vpop.xlane.xlu0 %276
        %v278 = vadd.f32 %v245, %v246
        %279 = vadd.xlane.f32.xlu0 %v278
        %v280 = vpop.xlane.xlu0 %279
        %v281 = vadd.f32 %v247, %v248
        %282 = vadd.xlane.f32.xlu0 %v281
        %v283 = vpop.xlane.xlu0 %282
        %v284 = vadd.f32 %v249, %v250
        %285 = vadd.xlane.f32.xlu0 %v284
        %v286 = vpop.xlane.xlu0 %285
        %v287 = vadd.f32 %v251, %v252
        %288 = vadd.xlane.f32.xlu0 %v287
        %v289 = vpop.xlane.xlu0 %288
        %v290 = vadd.f32 %v253, %v254
        %291 = vadd.xlane.f32.xlu0 %v290
        %v292 = vpop.xlane.xlu0 %291
        %v293 = vadd.f32 %v255, %v256
        %294 = vadd.xlane.f32.xlu0 %v293
        %v295 = vpop.xlane.xlu0 %294
        %v296 = vadd.f32 %v257, %v258
        %297 = vadd.xlane.f32.xlu0 %v296
        %v298 = vpop.xlane.xlu0 %297
        %v299 = vadd.f32 %v259, %v260
        %300 = vadd.xlane.f32.xlu0 %v299
        %v301 = vpop.xlane.xlu0 %300
        %v302 = vadd.f32 %v261, %v262
        %303 = vadd.xlane.f32.xlu0 %v302
        %v304 = vpop.xlane.xlu0 %303
        %v305 = vadd.f32 %v263, %v264
        %306 = vadd.xlane.f32.xlu0 %v305
        %v307 = vpop.xlane.xlu0 %306
        %v308 = vadd.f32 %v265, %v266
        %309 = vadd.xlane.f32.xlu0 %v308
        %v310 = vpop.xlane.xlu0 %309
        %v311 = vadd.f32 %v267, %v268
        %312 = vadd.xlane.f32.xlu0 %v311
        %v313 = vpop.xlane.xlu0 %312
        %v314 = vadd.f32 %v269, %v270
        %315 = vadd.xlane.f32.xlu0 %v314
        %v316 = vpop.xlane.xlu0 %315
        %v317 = vadd.f32 %v271, %v272
        %318 = vadd.xlane.f32.xlu0 %v317
        %v319 = vpop.xlane.xlu0 %318
        %v320 = vadd.f32 %v273, %v274
        %321 = vadd.xlane.f32.xlu0 %v320
        %v322 = vpop.xlane.xlu0 %321
        %v323 = vmul.f32 %v277, 0.00390625
        %v324 = vmul.f32 %v280, 0.00390625
        %v325 = vmul.f32 %v283, 0.00390625
        %v326 = vmul.f32 %v286, 0.00390625
        %v327 = vmul.f32 %v289, 0.00390625
        %v328 = vmul.f32 %v292, 0.00390625
        %v329 = vmul.f32 %v295, 0.00390625
        %v330 = vmul.f32 %v298, 0.00390625
        %v331 = vmul.f32 %v301, 0.00390625
        %v332 = vmul.f32 %v304, 0.00390625
        %v333 = vmul.f32 %v307, 0.00390625
        %v334 = vmul.f32 %v310, 0.00390625
        %v335 = vmul.f32 %v313, 0.00390625
        %v336 = vmul.f32 %v316, 0.00390625
        %v337 = vmul.f32 %v319, 0.00390625
        %v338 = vmul.f32 %v322, 0.00390625
        %v339 = vld [vmem:[%s1] sm:$0xff]
        %v340 = vld [vmem:[%s1 + $0x8] sm:$0xff]
        %v341 = vld [vmem:[%s1 + $0x10] sm:$0xff]
        %v342 = vld [vmem:[%s1 + $0x18] sm:$0xff]
        %v343 = vld [vmem:[%s1 + $0x20] sm:$0xff]
        %v344 = vld [vmem:[%s1 + $0x28] sm:$0xff]
        %v345 = vld [vmem:[%s1 + $0x30] sm:$0xff]
        %v346 = vld [vmem:[%s1 + $0x38] sm:$0xff]
        %v347 = vld [vmem:[%s1 + $0x40] sm:$0xff]
        %v348 = vld [vmem:[%s1 + $0x48] sm:$0xff]
        %v349 = vld [vmem:[%s1 + $0x50] sm:$0xff]
        %v350 = vld [vmem:[%s1 + $0x58] sm:$0xff]
        %v351 = vld [vmem:[%s1 + $0x60] sm:$0xff]
        %v352 = vld [vmem:[%s1 + $0x68] sm:$0xff]
        %v353 = vld [vmem:[%s1 + $0x70] sm:$0xff]
        %v354 = vld [vmem:[%s1 + $0x78] sm:$0xff]
        %v355 = vmul.f32 %v339, %v323
        %v356 = vmul.f32 %v340, %v324
        %v357 = vmul.f32 %v341, %v325
        %v358 = vmul.f32 %v342, %v326
        %v359 = vmul.f32 %v343, %v327
        %v360 = vmul.f32 %v344, %v328
        %v361 = vmul.f32 %v345, %v329
        %v362 = vmul.f32 %v346, %v330
        %v363 = vmul.f32 %v347, %v331
        %v364 = vmul.f32 %v348, %v332
        %v365 = vmul.f32 %v349, %v333
        %v366 = vmul.f32 %v350, %v334
        %v367 = vmul.f32 %v351, %v335
        %v368 = vmul.f32 %v352, %v336
        %v369 = vmul.f32 %v353, %v337
        %v370 = vmul.f32 %v354, %v338
        %vm371 = vcmask 64512
        %v372 = vsel %vm371, %v355, 0.0
        %v373 = vsel %vm371, %v356, 0.0
        %v374 = vadd.f32 %v372, %v373
        %v375 = vsel %vm371, %v357, 0.0
        %v376 = vadd.f32 %v374, %v375
        %v377 = vsel %vm371, %v358, 0.0
        %v378 = vadd.f32 %v376, %v377
        %v379 = vsel %vm371, %v359, 0.0
        %v380 = vadd.f32 %v378, %v379
        %v381 = vsel %vm371, %v360, 0.0
        %v382 = vadd.f32 %v380, %v381
        %v383 = vsel %vm371, %v361, 0.0
        %v384 = vadd.f32 %v382, %v383
        %v385 = vsel %vm371, %v362, 0.0
        %v386 = vadd.f32 %v384, %v385
        %v387 = vsel %vm371, %v363, 0.0
        %v388 = vadd.f32 %v386, %v387
        %v389 = vsel %vm371, %v364, 0.0
        %v390 = vadd.f32 %v388, %v389
        %v391 = vsel %vm371, %v365, 0.0
        %v392 = vadd.f32 %v390, %v391
        %v393 = vsel %vm371, %v366, 0.0
        %v394 = vadd.f32 %v392, %v393
        %v395 = vsel %vm371, %v367, 0.0
        %v396 = vadd.f32 %v394, %v395
        %v397 = vsel %vm371, %v368, 0.0
        %v398 = vadd.f32 %v396, %v397
        %v399 = vsel %vm371, %v369, 0.0
        %v400 = vadd.f32 %v398, %v399
        %v401 = vsel %vm371, %v370, 0.0
        %v402 = vadd.f32 %v400, %v401
        %v403 = vrot.slane %v402, 4
        %v404 = vadd.f32 %v402, %v403
        %v405 = vrot.slane %v404, 2
        %v406 = vadd.f32 %v404, %v405
        %v407 = vrot.slane %v406, 1
        %v408 = vadd.f32 %v406, %v407
        %v409 = vld [vmem:[%s2] sm:$0x1]
        %v410 = vadd.f32 %v408, %v409
        %v411 = vmax.f32 %v410, 0.0
        %v412 = vld [vmem:[%s3] sm:$0xff]
        %v413 = vld [vmem:[%s3 + $0x8] sm:$0xff]
        %v414 = vld [vmem:[%s3 + $0x10] sm:$0xff]
        %v415 = vld [vmem:[%s3 + $0x18] sm:$0xff]
        %v416 = vld [vmem:[%s3 + $0x20] sm:$0xff]
        %v417 = vld [vmem:[%s3 + $0x28] sm:$0xff]
        %v418 = vld [vmem:[%s3 + $0x30] sm:$0xff]
        %v419 = vld [vmem:[%s3 + $0x38] sm:$0xff]
        %v420 = vld [vmem:[%s3 + $0x40] sm:$0xff]
        %v421 = vld [vmem:[%s3 + $0x48] sm:$0xff]
        %v422 = vld [vmem:[%s3 + $0x50] sm:$0xff]
        %v423 = vld [vmem:[%s3 + $0x58] sm:$0xff]
        %v424 = vld [vmem:[%s3 + $0x60] sm:$0xff]
        %v425 = vld [vmem:[%s3 + $0x68] sm:$0xff]
        %v426 = vld [vmem:[%s3 + $0x70] sm:$0xff]
        %v427 = vld [vmem:[%s3 + $0x78] sm:$0xff]
        %v428 = vlaneseq
        %v429 = vshrl.u32 %v428, 7
        %v430 = vsub.s32 0, %v429
        %v431 = vrot.slane %v411, %v430
        %v432 = vmul.f32 %v412, %v431
        %v433 = vmul.f32 %v413, %v431
        %v434 = vmul.f32 %v414, %v431
        %v435 = vmul.f32 %v415, %v431
        %v436 = vmul.f32 %v416, %v431
        %v437 = vmul.f32 %v417, %v431
        %v438 = vmul.f32 %v418, %v431
        %v439 = vmul.f32 %v419, %v431
        %v440 = vmul.f32 %v420, %v431
        %v441 = vmul.f32 %v421, %v431
        %v442 = vmul.f32 %v422, %v431
        %v443 = vmul.f32 %v423, %v431
        %v444 = vmul.f32 %v424, %v431
        %v445 = vmul.f32 %v425, %v431
        %v446 = vmul.f32 %v426, %v431
        %v447 = vmul.f32 %v427, %v431
        %v448 = vsel %vm371, %v432, 0.0
        %449 = vadd.xlane.f32.xlu0 %v448
        %v450 = vpop.xlane.xlu0 %449
        %v451 = vsel %vm371, %v433, 0.0
        %452 = vadd.xlane.f32.xlu0 %v451
        %v453 = vpop.xlane.xlu0 %452
        %v454 = vsel %vm371, %v434, 0.0
        %455 = vadd.xlane.f32.xlu0 %v454
        %v456 = vpop.xlane.xlu0 %455
        %v457 = vsel %vm371, %v435, 0.0
        %458 = vadd.xlane.f32.xlu0 %v457
        %v459 = vpop.xlane.xlu0 %458
        %v460 = vsel %vm371, %v436, 0.0
        %461 = vadd.xlane.f32.xlu0 %v460
        %v462 = vpop.xlane.xlu0 %461
        %v463 = vsel %vm371, %v437, 0.0
        %464 = vadd.xlane.f32.xlu0 %v463
        %v465 = vpop.xlane.xlu0 %464
        %v466 = vsel %vm371, %v438, 0.0
        %467 = vadd.xlane.f32.xlu0 %v466
        %v468 = vpop.xlane.xlu0 %467
        %v469 = vsel %vm371, %v439, 0.0
        %470 = vadd.xlane.f32.xlu0 %v469
        %v471 = vpop.xlane.xlu0 %470
        %v472 = vsel %vm371, %v440, 0.0
        %473 = vadd.xlane.f32.xlu0 %v472
        %v474 = vpop.xlane.xlu0 %473
        %v475 = vsel %vm371, %v441, 0.0
        %476 = vadd.xlane.f32.xlu0 %v475
        %v477 = vpop.xlane.xlu0 %476
        %v478 = vsel %vm371, %v442, 0.0
        %479 = vadd.xlane.f32.xlu0 %v478
        %v480 = vpop.xlane.xlu0 %479
        %v481 = vsel %vm371, %v443, 0.0
        %482 = vadd.xlane.f32.xlu0 %v481
        %v483 = vpop.xlane.xlu0 %482
        %v484 = vsel %vm371, %v444, 0.0
        %485 = vadd.xlane.f32.xlu0 %v484
        %v486 = vpop.xlane.xlu0 %485
        %v487 = vsel %vm371, %v445, 0.0
        %488 = vadd.xlane.f32.xlu0 %v487
        %v489 = vpop.xlane.xlu0 %488
        %v490 = vsel %vm371, %v446, 0.0
        %491 = vadd.xlane.f32.xlu0 %v490
        %v492 = vpop.xlane.xlu0 %491
        %v493 = vsel %vm371, %v447, 0.0
        %494 = vadd.xlane.f32.xlu0 %v493
        %v495 = vpop.xlane.xlu0 %494
        %v496 = vld [vmem:[%s4] sm:$0xff]
        %v497 = vld [vmem:[%s4 + $0x8] sm:$0xff]
        %v498 = vld [vmem:[%s4 + $0x10] sm:$0xff]
        %v499 = vld [vmem:[%s4 + $0x18] sm:$0xff]
        %v500 = vld [vmem:[%s4 + $0x20] sm:$0xff]
        %v501 = vld [vmem:[%s4 + $0x28] sm:$0xff]
        %v502 = vld [vmem:[%s4 + $0x30] sm:$0xff]
        %v503 = vld [vmem:[%s4 + $0x38] sm:$0xff]
        %v504 = vld [vmem:[%s4 + $0x40] sm:$0xff]
        %v505 = vld [vmem:[%s4 + $0x48] sm:$0xff]
        %v506 = vld [vmem:[%s4 + $0x50] sm:$0xff]
        %v507 = vld [vmem:[%s4 + $0x58] sm:$0xff]
        %v508 = vld [vmem:[%s4 + $0x60] sm:$0xff]
        %v509 = vld [vmem:[%s4 + $0x68] sm:$0xff]
        %v510 = vld [vmem:[%s4 + $0x70] sm:$0xff]
        %v511 = vld [vmem:[%s4 + $0x78] sm:$0xff]
        %v512 = vadd.f32 %v450, %v496
        %v513 = vadd.f32 %v453, %v497
        %v514 = vadd.f32 %v456, %v498
        %v515 = vadd.f32 %v459, %v499
        %v516 = vadd.f32 %v462, %v500
        %v517 = vadd.f32 %v465, %v501
        %v518 = vadd.f32 %v468, %v502
        %v519 = vadd.f32 %v471, %v503
        %v520 = vadd.f32 %v474, %v504
        %v521 = vadd.f32 %v477, %v505
        %v522 = vadd.f32 %v480, %v506
        %v523 = vadd.f32 %v483, %v507
        %v524 = vadd.f32 %v486, %v508
        %v525 = vadd.f32 %v489, %v509
        %v526 = vadd.f32 %v492, %v510
        %v527 = vadd.f32 %v495, %v511
        %v528 = vxor.u32 %v512, 2147483648
        %v529 = vxor.u32 %v513, 2147483648
        %v530 = vxor.u32 %v514, 2147483648
        %v531 = vxor.u32 %v515, 2147483648
        %v532 = vxor.u32 %v516, 2147483648
        %v533 = vxor.u32 %v517, 2147483648
        %v534 = vxor.u32 %v518, 2147483648
        %v535 = vxor.u32 %v519, 2147483648
        %v536 = vxor.u32 %v520, 2147483648
        %v537 = vxor.u32 %v521, 2147483648
        %v538 = vxor.u32 %v522, 2147483648
        %v539 = vxor.u32 %v523, 2147483648
        %v540 = vxor.u32 %v524, 2147483648
        %v541 = vxor.u32 %v525, 2147483648
        %v542 = vxor.u32 %v526, 2147483648
        %v543 = vxor.u32 %v527, 2147483648
        %v544 = vmul.f32 %v528, 1.442695
        %v545 = vpow.pop %v544
        %v546 = vmul.f32 %v529, 1.442695
        %v547 = vpow.pop %v546
        %v548 = vmul.f32 %v530, 1.442695
        %v549 = vpow.pop %v548
        %v550 = vmul.f32 %v531, 1.442695
        %v551 = vpow.pop %v550
        %v552 = vmul.f32 %v532, 1.442695
        %v553 = vpow.pop %v552
        %v554 = vmul.f32 %v533, 1.442695
        %v555 = vpow.pop %v554
        %v556 = vmul.f32 %v534, 1.442695
        %v557 = vpow.pop %v556
        %v558 = vmul.f32 %v535, 1.442695
        %v559 = vpow.pop %v558
        %v560 = vmul.f32 %v536, 1.442695
        %v561 = vpow.pop %v560
        %v562 = vmul.f32 %v537, 1.442695
        %v563 = vpow.pop %v562
        %v564 = vmul.f32 %v538, 1.442695
        %v565 = vpow.pop %v564
        %v566 = vmul.f32 %v539, 1.442695
        %v567 = vpow.pop %v566
        %v568 = vmul.f32 %v540, 1.442695
        %v569 = vpow.pop %v568
        %v570 = vmul.f32 %v541, 1.442695
        %v571 = vpow.pop %v570
        %v572 = vmul.f32 %v542, 1.442695
        %v573 = vpow.pop %v572
        %v574 = vmul.f32 %v543, 1.442695
        %v575 = vpow.pop %v574
        %v576 = vadd.f32 %v545, 1.0
        %v577 = vadd.f32 %v547, 1.0
        %v578 = vadd.f32 %v549, 1.0
        %v579 = vadd.f32 %v551, 1.0
        %v580 = vadd.f32 %v553, 1.0
        %v581 = vadd.f32 %v555, 1.0
        %v582 = vadd.f32 %v557, 1.0
        %v583 = vadd.f32 %v559, 1.0
        %v584 = vadd.f32 %v561, 1.0
        %v585 = vadd.f32 %v563, 1.0
        %v586 = vadd.f32 %v565, 1.0
        %v587 = vadd.f32 %v567, 1.0
        %v588 = vadd.f32 %v569, 1.0
        %v589 = vadd.f32 %v571, 1.0
        %v590 = vadd.f32 %v573, 1.0
        %v591 = vadd.f32 %v575, 1.0
        %v592 = vrcp.pop %v576
        %v593 = vmul.f32 1.0, %v592
        %v594 = vrcp.pop %v577
        %v595 = vmul.f32 1.0, %v594
        %v596 = vrcp.pop %v578
        %v597 = vmul.f32 1.0, %v596
        %v598 = vrcp.pop %v579
        %v599 = vmul.f32 1.0, %v598
        %v600 = vrcp.pop %v580
        %v601 = vmul.f32 1.0, %v600
        %v602 = vrcp.pop %v581
        %v603 = vmul.f32 1.0, %v602
        %v604 = vrcp.pop %v582
        %v605 = vmul.f32 1.0, %v604
        %v606 = vrcp.pop %v583
        %v607 = vmul.f32 1.0, %v606
        %v608 = vrcp.pop %v584
        %v609 = vmul.f32 1.0, %v608
        %v610 = vrcp.pop %v585
        %v611 = vmul.f32 1.0, %v610
        %v612 = vrcp.pop %v586
        %v613 = vmul.f32 1.0, %v612
        %v614 = vrcp.pop %v587
        %v615 = vmul.f32 1.0, %v614
        %v616 = vrcp.pop %v588
        %v617 = vmul.f32 1.0, %v616
        %v618 = vrcp.pop %v589
        %v619 = vmul.f32 1.0, %v618
        %v620 = vrcp.pop %v590
        %v621 = vmul.f32 1.0, %v620
        %v622 = vrcp.pop %v591
        %v623 = vmul.f32 1.0, %v622
        %v624 = vadd.f32 %v593, 1.0
        %v625 = vadd.f32 %v595, 1.0
        %v626 = vadd.f32 %v597, 1.0
        %v627 = vadd.f32 %v599, 1.0
        %v628 = vadd.f32 %v601, 1.0
        %v629 = vadd.f32 %v603, 1.0
        %v630 = vadd.f32 %v605, 1.0
        %v631 = vadd.f32 %v607, 1.0
        %v632 = vadd.f32 %v609, 1.0
        %v633 = vadd.f32 %v611, 1.0
        %v634 = vadd.f32 %v613, 1.0
        %v635 = vadd.f32 %v615, 1.0
        %v636 = vadd.f32 %v617, 1.0
        %v637 = vadd.f32 %v619, 1.0
        %v638 = vadd.f32 %v621, 1.0
        %v639 = vadd.f32 %v623, 1.0
        %641 = vset.pattern.permute.xlu0 0
        %642 = vperm.xlu0 %641, %v624
        %v643 = vpop.permute.xlu0 %642
        %646 = vset.pattern.permute.xlu0 0
        %647 = vperm.xlu0 %646, %v625
        %v648 = vpop.permute.xlu0 %647
        %651 = vset.pattern.permute.xlu0 0
        %652 = vperm.xlu0 %651, %v626
        %v653 = vpop.permute.xlu0 %652
        %656 = vset.pattern.permute.xlu0 0
        %657 = vperm.xlu0 %656, %v627
        %v658 = vpop.permute.xlu0 %657
        %661 = vset.pattern.permute.xlu0 0
        %662 = vperm.xlu0 %661, %v628
        %v663 = vpop.permute.xlu0 %662
        %666 = vset.pattern.permute.xlu0 0
        %667 = vperm.xlu0 %666, %v629
        %v668 = vpop.permute.xlu0 %667
        %671 = vset.pattern.permute.xlu0 0
        %672 = vperm.xlu0 %671, %v630
        %v673 = vpop.permute.xlu0 %672
        %676 = vset.pattern.permute.xlu0 0
        %677 = vperm.xlu0 %676, %v631
        %v678 = vpop.permute.xlu0 %677
        %681 = vset.pattern.permute.xlu0 0
        %682 = vperm.xlu0 %681, %v632
        %v683 = vpop.permute.xlu0 %682
        %686 = vset.pattern.permute.xlu0 0
        %687 = vperm.xlu0 %686, %v633
        %v688 = vpop.permute.xlu0 %687
        %691 = vset.pattern.permute.xlu0 0
        %692 = vperm.xlu0 %691, %v634
        %v693 = vpop.permute.xlu0 %692
        %696 = vset.pattern.permute.xlu0 0
        %697 = vperm.xlu0 %696, %v635
        %v698 = vpop.permute.xlu0 %697
        %701 = vset.pattern.permute.xlu0 0
        %702 = vperm.xlu0 %701, %v636
        %v703 = vpop.permute.xlu0 %702
        %706 = vset.pattern.permute.xlu0 0
        %707 = vperm.xlu0 %706, %v637
        %v708 = vpop.permute.xlu0 %707
        %711 = vset.pattern.permute.xlu0 0
        %712 = vperm.xlu0 %711, %v638
        %v713 = vpop.permute.xlu0 %712
        %716 = vset.pattern.permute.xlu0 0
        %717 = vperm.xlu0 %716, %v639
        %v718 = vpop.permute.xlu0 %717
        %v720 = vmul.f32 %v243, %v643
        %v721 = vmul.f32 %v244, %v643
        %v722 = vmul.f32 %v245, %v648
        %v723 = vmul.f32 %v246, %v648
        %v724 = vmul.f32 %v247, %v653
        %v725 = vmul.f32 %v248, %v653
        %v726 = vmul.f32 %v249, %v658
        %v727 = vmul.f32 %v250, %v658
        %v728 = vmul.f32 %v251, %v663
        %v729 = vmul.f32 %v252, %v663
        %v730 = vmul.f32 %v253, %v668
        %v731 = vmul.f32 %v254, %v668
        %v732 = vmul.f32 %v255, %v673
        %v733 = vmul.f32 %v256, %v673
        %v734 = vmul.f32 %v257, %v678
        %v735 = vmul.f32 %v258, %v678
        %v736 = vmul.f32 %v259, %v683
        %v737 = vmul.f32 %v260, %v683
        %v738 = vmul.f32 %v261, %v688
        %v739 = vmul.f32 %v262, %v688
        %v740 = vmul.f32 %v263, %v693
        %v741 = vmul.f32 %v264, %v693
        %v742 = vmul.f32 %v265, %v698
        %v743 = vmul.f32 %v266, %v698
        %v744 = vmul.f32 %v267, %v703
        %v745 = vmul.f32 %v268, %v703
        %v746 = vmul.f32 %v269, %v708
        %v747 = vmul.f32 %v270, %v708
        %v748 = vmul.f32 %v271, %v713
        %v749 = vmul.f32 %v272, %v713
        %v750 = vmul.f32 %v273, %v718
        %v751 = vmul.f32 %v274, %v718
        %752 = vst [vmem:[%s242] sm:$0xff] %v720
        %753 = vst [vmem:[%s242 + $0x8] sm:$0xff] %v721
        %754 = vst [vmem:[%s242 + $0x10] sm:$0xff] %v722
        %755 = vst [vmem:[%s242 + $0x18] sm:$0xff] %v723
        %756 = vst [vmem:[%s242 + $0x20] sm:$0xff] %v724
        %757 = vst [vmem:[%s242 + $0x28] sm:$0xff] %v725
        %758 = vst [vmem:[%s242 + $0x30] sm:$0xff] %v726
        %759 = vst [vmem:[%s242 + $0x38] sm:$0xff] %v727
        %760 = vst [vmem:[%s242 + $0x40] sm:$0xff] %v728
        %761 = vst [vmem:[%s242 + $0x48] sm:$0xff] %v729
        %762 = vst [vmem:[%s242 + $0x50] sm:$0xff] %v730
        %763 = vst [vmem:[%s242 + $0x58] sm:$0xff] %v731
        %764 = vst [vmem:[%s242 + $0x60] sm:$0xff] %v732
        %765 = vst [vmem:[%s242 + $0x68] sm:$0xff] %v733
        %766 = vst [vmem:[%s242 + $0x70] sm:$0xff] %v734
        %767 = vst [vmem:[%s242 + $0x78] sm:$0xff] %v735
        %768 = vst [vmem:[%s242 + $0x80] sm:$0xff] %v736
        %769 = vst [vmem:[%s242 + $0x88] sm:$0xff] %v737
        %770 = vst [vmem:[%s242 + $0x90] sm:$0xff] %v738
        %771 = vst [vmem:[%s242 + $0x98] sm:$0xff] %v739
        %772 = vst [vmem:[%s242 + $0xa0] sm:$0xff] %v740
        %773 = vst [vmem:[%s242 + $0xa8] sm:$0xff] %v741
        %774 = vst [vmem:[%s242 + $0xb0] sm:$0xff] %v742
        %775 = vst [vmem:[%s242 + $0xb8] sm:$0xff] %v743
        %776 = vst [vmem:[%s242 + $0xc0] sm:$0xff] %v744
        %777 = vst [vmem:[%s242 + $0xc8] sm:$0xff] %v745
        %778 = vst [vmem:[%s242 + $0xd0] sm:$0xff] %v746
        %779 = vst [vmem:[%s242 + $0xd8] sm:$0xff] %v747
        %780 = vst [vmem:[%s242 + $0xe0] sm:$0xff] %v748
        %781 = vst [vmem:[%s242 + $0xe8] sm:$0xff] %v749
        %782 = vst [vmem:[%s242 + $0xf0] sm:$0xff] %v750
        %783 = vst [vmem:[%s242 + $0xf8] sm:$0xff] %v751
        %s784 = sand.u32 %s140, 1
        %s785 = scalar_lea.sflag [#allocation4], %s784
        %s786 = sand.u32 %s140, 1
        %s787 = smul.addr %s786, 256
        %s788 = scalar_lea.vmem [#allocation5], %s787
        // Predicated region
        $region45: #{tpu_custom_call.1} parent=39 // pred_check
          %p789 = pneg %p150
        $region46: #{tpu_custom_call.1} parent=39 // pred_check_branch
          %791 = sbr.rel (%p789) target = $region48
        $region47: #{tpu_custom_call.1} parent=39 // pred_region
          %s793 = ssub.s32 4096, 4096
          %794 = vsyncadd %s785, %s793
          %s795 = smul.addr %s22, 32
          %s796 = smul.addr %s795, 128
          %s797 = scalar_lea.hbm %s5, %s796
          %s798 = sshll.u32 %s788, 4
          %s799 = int_to_ptr.vmem [resolvable:$true] %s798
          %804 = dma.vmem_to_hbm [thread:$0]  %s799, 4096, %s797, %s785, 256, 256, 16
        $region48: #{tpu_custom_call.1} parent=39 // pred_fallthru
          _
      $region40: #{tpu_custom_call.1} parent=5 // pred_fallthru
        _
      %p805 = scmp.le.s32.totalorder 2, %s17
      // Predicated region
      $region49: #{tpu_custom_call.1} parent=5 // pred_check
        %p806 = pneg %p805
      $region50: #{tpu_custom_call.1} parent=5 // pred_check_branch
        %808 = sbr.rel (%p806) target = $region52
      $region51: #{tpu_custom_call.1} parent=5 // pred_region
        %s809 = ssub.s32 %s17, 2
        // Predicated region
        $region53: #{tpu_custom_call.1} parent=51 // pred_check
          %p810 = pneg %p156
        $region54: #{tpu_custom_call.1} parent=51 // pred_check_branch
          %812 = sbr.rel (%p810) target = $region56
        $region55: #{tpu_custom_call.1} parent=51 // pred_region
          %s813 = sand.u32 %s141, 1
          %s814 = scalar_lea.sflag [#allocation4], %s813
          %s815 = sand.u32 %s141, 1
          %s816 = smul.addr %s815, 256
          %s817 = scalar_lea.vmem [#allocation5], %s816
          %818 = dma.done %s814, 4096
        $region56: #{tpu_custom_call.1} parent=51 // pred_fallthru
          _
      $region52: #{tpu_custom_call.1} parent=5 // pred_fallthru
        _
    $region6: #{tpu_custom_call.1} parent=1 // loop_footer
      %s21 = sadd.s32 1, %s17
    $region7: #{tpu_custom_call.1} parent=1 // loop_footer_branch
      %16 = sbr.rel target = $region3
    $region8: #{tpu_custom_call.1} parent=1 // loop_exit
      _
    %819 = vsyncpa [#allocation3], 1
    %s820 = scalar_lea.sflag [#allocation3], 1
    %821 = vsyncpa %s820, 1
    %822 = vsyncpa [#allocation4], 1
    %s823 = scalar_lea.sflag [#allocation4], 1
    %824 = vsyncpa %s823, 1

</llo_original>
